<compile_context>
chip_gen: v7x
topology: tpu7x:2x2x1
jax: 0.10.0
libtpu: 0.0.40
codegen_flags: <defaults>
</compile_context>

<pallas_src>
import math

import jax
import jax.numpy as jnp
from jax.experimental import pallas as pl
from jax.experimental.pallas import tpu as pltpu

ALPHA = 0.2  # LeakyReLU negative slope

# Keep double-buffered in+out tiles comfortably under v7x's 64 MiB physical
# VMEM per TensorCore (v5e/v6e have 128 MiB, so this is the binding cap).
_VMEM_TILE_BUDGET = 40 * 1024 * 1024


def node_attention_kernel(h_ref, proj_ref, expand_ref, o_ref):
    """One batch tile of the fused NodeAttention forward.

    h_ref:      (TB, M*F)  lane-dense batch tile of h
    proj_ref:   (M*F, M)   block-diagonal copy of `a`: proj[m*F + f, m] = a[f]
    expand_ref: (M, M*F)   segment one-hot:            expand[m, m*F + f] = 1
    o_ref:      (TB, M*F)
    """
    h = h_ref[...].astype(jnp.float32)                                 # (TB, MF)

    # e[b, m] = sum_f h[b, m, f] * a[f]  -- one small MXU matmul per big tile.
    # HIGHEST precision: extra MXU passes are free (kernel is HBM-bound) and
    # keep the softmax logits at full f32 accuracy.
    e = jnp.dot(h, proj_ref[...],
                preferred_element_type=jnp.float32,
                precision=jax.lax.Precision.HIGHEST)                   # (TB, M)

    # LeakyReLU then softmax over the modality axis (last axis here).
    e = jnp.where(e > 0, e, ALPHA * e)
    m = jnp.max(e, axis=-1, keepdims=True)
    p = jnp.exp(e - m)
    denom = jnp.sum(p, axis=-1, keepdims=True)
    att = p * pl.reciprocal(denom, approx=False)                       # (TB, M)

    # Broadcast per-modality attention back to the fused M*F lane axis.
    att_full = jnp.dot(att, expand_ref[...],
                       preferred_element_type=jnp.float32,
                       precision=jax.lax.Precision.HIGHEST)            # (TB, MF)

    # weighted_h + h == h * (1 + attention)
    o_ref[...] = (h * (1.0 + att_full)).astype(o_ref.dtype)


def _cdiv(x, y):
    return (x + y - 1) // y


def _choose_tiling(batch, block_b):
    """Pick (tile_rows, num_tiles) for the batch axis.

    * Single tile covering the whole batch when it fits (full-extent block,
      so no divisibility constraint and no masking).
    * Otherwise multiple-of-8 tiles, and an even tile count (>= 2) once the
      batch is large enough that splitting across v7x's two TensorCores pays.
    """
    num_tiles = max(1, _cdiv(batch, block_b))
    if batch >= 1024:
        num_tiles = max(2, num_tiles)
        num_tiles += num_tiles % 2          # even -> both TCs get equal work
    if num_tiles == 1:
        return batch, 1
    tb = _cdiv(_cdiv(batch, num_tiles), 8) * 8
    return tb, _cdiv(batch, tb)


def node_attention(h, a, *, block_b=8192, donate_h=False):
    """h: (B, M, F), a: (F, 1) -> (B, M, F).  out = h * softmax(lrelu(h@a), M) + h."""
    B, M, F = h.shape
    MF = M * F
    itemsize = jnp.dtype(h.dtype).itemsize

    # Lane-dense view: fuse (M, F) onto the last (lane) axis.  Free reshape.
    h2d = h.reshape(B, MF)

    # Small constant operands for the in-kernel segmented reduce / broadcast.
    eye_m = jnp.eye(M, dtype=jnp.float32)
    proj = jnp.kron(eye_m, a.astype(jnp.float32).reshape(F, 1))    # (MF, M)
    expand = jnp.kron(eye_m, jnp.ones((1, F), dtype=jnp.float32))  # (M, MF)

    # Cap the batch tile so double-buffered in+out fits the VMEM budget
    # (binding constraint is v7x's 64 MiB physical VMEM per TC).
    max_tb = max(8, ((_VMEM_TILE_BUDGET // (4 * MF * itemsize)) // 8) * 8)
    block_b = max(8, min(block_b, max_tb))

    TB, num_tiles = _choose_tiling(B, block_b)

    # Explicit scoped-VMEM limit sized from the tiles so large tiles also fit
    # under v5e's 16 MiB default; capped below v7x's 64 MiB physical VMEM.
    tile_bytes = TB * MF * itemsize
    vmem_need = 4 * tile_bytes + 8 * MF * M * 4 + (2 << 20)
    vmem_limit = int(min(max(vmem_need, 16 << 20), 48 << 20))

    cost = pl.CostEstimate(
        flops=4 * B * MF * M + 8 * B * MF,
        transcendentals=B * M,
        bytes_accessed=2 * B * MF * itemsize,
    )

    out2d = pl.pallas_call(
        node_attention_kernel,
        out_shape=jax.ShapeDtypeStruct((B, MF), h.dtype),
        grid_spec=pltpu.PrefetchScalarGridSpec(
            num_scalar_prefetch=0,
            grid=(num_tiles,),
            in_specs=[
                pl.BlockSpec((TB, MF), lambda i: (i, 0)),
                pl.BlockSpec((MF, M), lambda i: (0, 0)),   # invariant weight
                pl.BlockSpec((M, MF), lambda i: (0, 0)),   # invariant weight
            ],
            out_specs=pl.BlockSpec((TB, MF), lambda i: (i, 0)),
        ),
        compiler_params=pltpu.CompilerParams(
            dimension_semantics=("parallel",),
            vmem_limit_bytes=vmem_limit,
        ),
        cost_estimate=cost,
        # Optional in-place update when the caller no longer needs h.
        input_output_aliases=({0: 0} if donate_h else {}),
    )(h2d, proj, expand)

    return out2d.reshape(B, M, F)


def node_attention_ref(h, a):
    e = jnp.einsum("bmf,fo->bmo", h, a)
    e = jnp.where(e > 0, e, ALPHA * e)
    att = jax.nn.softmax(e, axis=1)
    return h * att + h


if __name__ == "__main__":
    key = jax.random.PRNGKey(0)
    k_h, k_a, k_h2 = jax.random.split(key, 3)

    B, M, F = 2, 4, 32  # batch, num_modalities, in_features

    h = jax.random.normal(k_h, (B, M, F), dtype=jnp.float32)

    # Xavier-uniform init for a: shape (in_features, 1), gain=1.414
    gain = 1.414
    bound = gain * math.sqrt(6.0 / (F + 1))
    a = jax.random.uniform(k_a, (F, 1), dtype=jnp.float32,
                           minval=-bound, maxval=bound)

    out = jax.block_until_ready(node_attention(h, a))
    ref = node_attention_ref(h, a)
    assert out.shape == (B, M, F)
    assert jnp.allclose(out, ref, atol=1e-5, rtol=1e-5), "mismatch vs reference"

    # Ragged multi-tile path: batch not divisible by the tile -> exercises the
    # no-pad / no-slice grid with a masked partial last tile.
    B2 = 300
    h2 = jax.random.normal(k_h2, (B2, M, F), dtype=jnp.float32)
    out2 = jax.block_until_ready(node_attention(h2, a, block_b=64))
    ref2 = node_attention_ref(h2, a)
    assert out2.shape == (B2, M, F)
    assert jnp.allclose(out2, ref2, atol=1e-5, rtol=1e-5), "ragged mismatch vs reference"

    print("KERNEL_OK")
</pallas_src>

<mosaic_0001>
module attributes {stable_mosaic.version = 11 : i64} {
  func.func @node_attention_kernel(%arg0: i32, %arg1: memref<2x128xf32, #tpu.memory_space<vmem>>, %arg2: memref<128x4xf32, #tpu.memory_space<vmem>>, %arg3: memref<4x128xf32, #tpu.memory_space<vmem>>, %arg4: memref<2x128xf32, #tpu.memory_space<vmem>>) attributes {dimension_semantics = [#tpu.dimension_semantics<parallel>], iteration_bounds = array<i64: 1>, scalar_prefetch = 0 : i64, scratch_operands = 0 : i64, tpu.core_type = #tpu.core_type<tc>, window_params = [{transform_indices = @transform_0, window_bounds = array<i64: 2, 128>}, {pipeline_mode = #tpu.pipeline_mode<synchronous>, transform_indices = @transform_1, window_bounds = array<i64: 128, 4>}, {pipeline_mode = #tpu.pipeline_mode<synchronous>, transform_indices = @transform_2, window_bounds = array<i64: 4, 128>}, {transform_indices = @transform_3, window_bounds = array<i64: 2, 128>}]} {
    %c0 = arith.constant 0 : index
    %c0_0 = arith.constant 0 : index
    %0 = vector.load %arg1[%c0, %c0_0] : memref<2x128xf32, #tpu.memory_space<vmem>>, vector<2x128xf32>
    %c0_1 = arith.constant 0 : index
    %c0_2 = arith.constant 0 : index
    %1 = vector.load %arg2[%c0_1, %c0_2] : memref<128x4xf32, #tpu.memory_space<vmem>>, vector<128x4xf32>
    %cst = arith.constant dense<0.000000e+00> : vector<2x4xf32>
    %2 = tpu.matmul %0, %1, %cst {dimension_numbers = #tpu.dot_dimension_numbers<[1], [0], [0], [1], [0, 0, 1, 1], [], []>, precision = #tpu.contract_precision<fp32>} : vector<2x128xf32>, vector<128x4xf32>, vector<2x4xf32> -> vector<2x4xf32>
    %cst_3 = arith.constant 0.000000e+00 : f32
    %3 = vector.broadcast %cst_3 : f32 to vector<2x4xf32>
    %4 = arith.cmpf ogt, %2, %3 : vector<2x4xf32>
    %cst_4 = arith.constant 2.000000e-01 : f32
    %5 = vector.broadcast %cst_4 : f32 to vector<2x4xf32>
    %6 = arith.mulf %5, %2 : vector<2x4xf32>
    %7 = arith.select %4, %2, %6 : vector<2x4xi1>, vector<2x4xf32>
    %cst_5 = arith.constant dense<0xFF800000> : vector<2xf32>
    %8 = vector.multi_reduction <maximumf>, %7, %cst_5 [1] : vector<2x4xf32> to vector<2xf32>
    %9 = vector.shape_cast %8 : vector<2xf32> to vector<2x1xf32>
    %10 = vector.broadcast %9 : vector<2x1xf32> to vector<2x4xf32>
    %11 = arith.subf %7, %10 : vector<2x4xf32>
    %12 = math.exp %11 : vector<2x4xf32>
    %cst_6 = arith.constant dense<0.000000e+00> : vector<2xf32>
    %13 = vector.multi_reduction <add>, %12, %cst_6 [1] : vector<2x4xf32> to vector<2xf32>
    %14 = vector.shape_cast %13 : vector<2xf32> to vector<2x1xf32>
    %15 = tpu.reciprocal %14 : vector<2x1xf32> -> vector<2x1xf32>
    %16 = vector.broadcast %15 : vector<2x1xf32> to vector<2x4xf32>
    %17 = arith.mulf %12, %16 : vector<2x4xf32>
    %c0_7 = arith.constant 0 : index
    %c0_8 = arith.constant 0 : index
    %18 = vector.load %arg3[%c0_7, %c0_8] : memref<4x128xf32, #tpu.memory_space<vmem>>, vector<4x128xf32>
    %cst_9 = arith.constant dense<0.000000e+00> : vector<2x128xf32>
    %19 = tpu.matmul %17, %18, %cst_9 {dimension_numbers = #tpu.dot_dimension_numbers<[1], [0], [0], [1], [0, 0, 1, 1], [], []>, precision = #tpu.contract_precision<fp32>} : vector<2x4xf32>, vector<4x128xf32>, vector<2x128xf32> -> vector<2x128xf32>
    %cst_10 = arith.constant 1.000000e+00 : f32
    %20 = vector.broadcast %cst_10 : f32 to vector<2x128xf32>
    %21 = arith.addf %20, %19 : vector<2x128xf32>
    %22 = arith.mulf %0, %21 : vector<2x128xf32>
    %c0_11 = arith.constant 0 : index
    %c0_12 = arith.constant 0 : index
    %23 = vector.load %arg4[%c0_11, %c0_12] : memref<2x128xf32, #tpu.memory_space<vmem>>, vector<2x128xf32>
    tpu.vector_store %arg4[%c0_11, %c0_12], %22 {strides = array<i32>} : memref<2x128xf32, #tpu.memory_space<vmem>>, vector<2x128xf32>,
    return
  }
  func.func @transform_0(%arg0: i32) -> (i32, i32) {
    %c0_i32 = arith.constant 0 : i32
    %c0_i32_0 = arith.constant 0 : i32
    return %arg0, %c0_i32 : i32, i32
  }
  func.func @transform_1(%arg0: i32) -> (i32, i32) {
    %c0_i32 = arith.constant 0 : i32
    %c0_i32_0 = arith.constant 0 : i32
    %c0_i32_1 = arith.constant 0 : i32
    return %c0_i32, %c0_i32_0 : i32, i32
  }
  func.func @transform_2(%arg0: i32) -> (i32, i32) {
    %c0_i32 = arith.constant 0 : i32
    %c0_i32_0 = arith.constant 0 : i32
    %c0_i32_1 = arith.constant 0 : i32
    return %c0_i32, %c0_i32_0 : i32, i32
  }
  func.func @transform_3(%arg0: i32) -> (i32, i32) {
    %c0_i32 = arith.constant 0 : i32
    %c0_i32_0 = arith.constant 0 : i32
    return %arg0, %c0_i32 : i32, i32
  }
}

</mosaic_0001>

<llo_original>
// kernel: tpu_custom_call.1
$region0: #{tpu_custom_call.1}
  #allocation0 [shape = 'u32[]', space=smem, size = 0x4, offset = 0x4, fixed_abs, tag = 'smem constant byte address 0x4 - core index']
  #allocation1 [shape = 'u32[144,128]{1,0:T(1,128)}', space=vmem, size = 0x12000, scoped, tag = 'internal scratch']
  %s0 = inlined_call_operand.vmem [shape: f32[2,128], index: 0, kind: input, shape index: {}]
  %s1 = inlined_call_operand.vmem [shape: f32[128,4], index: 1, kind: input, shape index: {}]
  %s2 = inlined_call_operand.vmem [shape: f32[4,128], index: 2, kind: input, shape index: {}]
  %s3 = inlined_call_operand.hbm [shape: f32[2,128], index: 3, kind: output, shape index: {}]
  %s4 = sld [smem:[#allocation0]]
  $region22: #{tpu_custom_call.1} parent=0
    _
  %s6 = ssub.s32 1, %s4
  %s7 = scalar_select 0, %s6, %s4
  $region1: #{tpu_custom_call.1} parent=0
    #allocation2 [shape = 'u8[1024]{0}', space=vmem, size = 0x400, scoped, tag = 'output window, operand 0, single buffered']
    #allocation3 [shape = 's32[1]{0}', space=sflag, size = 0x4, scoped, tag = 'scoped memory for tpu_custom_call.1']
    %8 = vsyncpa [#allocation3], 0
    // Predicated region
    $region2: #{tpu_custom_call.1} parent=1 // pred_check
      _
    $region3: #{tpu_custom_call.1} parent=1 // pred_check_branch
      %10 = sbr.rel (0) target = $region5
    $region4: #{tpu_custom_call.1} parent=1 // pred_region
      _
    $region5: #{tpu_custom_call.1} parent=1 // pred_fallthru
      _
    // Predicated region
    $region6: #{tpu_custom_call.1} parent=1 // pred_check
      _
    $region7: #{tpu_custom_call.1} parent=1 // pred_check_branch
      %12 = sbr.rel (0) target = $region9
    $region8: #{tpu_custom_call.1} parent=1 // pred_region
      _
    $region9: #{tpu_custom_call.1} parent=1 // pred_fallthru
      _
    // Predicated region
    $region10: #{tpu_custom_call.1} parent=1 // pred_check
      _
    $region11: #{tpu_custom_call.1} parent=1 // pred_check_branch
      %14 = sbr.rel (0) target = $region13
    $region12: #{tpu_custom_call.1} parent=1 // pred_region
      _
    $region13: #{tpu_custom_call.1} parent=1 // pred_fallthru
      _
    %v15 = vld [vmem:[%s0] sm:$0x3]
    %v16 = vld [vmem:[%s1] sm:$0xff]
    %v17 = vld [vmem:[%s1 + $0x8] sm:$0xff]
    %v18 = vld [vmem:[%s1 + $0x10] sm:$0xff]
    %v19 = vld [vmem:[%s1 + $0x18] sm:$0xff]
    %v20 = vld [vmem:[%s1 + $0x20] sm:$0xff]
    %v21 = vld [vmem:[%s1 + $0x28] sm:$0xff]
    %v22 = vld [vmem:[%s1 + $0x30] sm:$0xff]
    %v23 = vld [vmem:[%s1 + $0x38] sm:$0xff]
    %v24 = vld [vmem:[%s1 + $0x40] sm:$0xff]
    %v25 = vld [vmem:[%s1 + $0x48] sm:$0xff]
    %v26 = vld [vmem:[%s1 + $0x50] sm:$0xff]
    %v27 = vld [vmem:[%s1 + $0x58] sm:$0xff]
    %v28 = vld [vmem:[%s1 + $0x60] sm:$0xff]
    %v29 = vld [vmem:[%s1 + $0x68] sm:$0xff]
    %v30 = vld [vmem:[%s1 + $0x70] sm:$0xff]
    %v31 = vld [vmem:[%s1 + $0x78] sm:$0xff]
    %32 = vmatprep.subr.mxu0 0.0
    %v33 = vand.u32 %v16, 4294901760
    %34 = vmatpush1.msra.mxu0 %v33
    %35 = vmatprep.subr.mxu0 0.0
    %v36 = vand.u32 %v17, 4294901760
    %37 = vmatpush1.msra.mxu0 %v36
    %38 = vmatprep.subr.mxu0 0.0
    %v39 = vand.u32 %v18, 4294901760
    %40 = vmatpush1.msra.mxu0 %v39
    %41 = vmatprep.subr.mxu0 0.0
    %v42 = vand.u32 %v19, 4294901760
    %43 = vmatpush1.msra.mxu0 %v42
    %44 = vmatprep.subr.mxu0 0.0
    %v45 = vand.u32 %v20, 4294901760
    %46 = vmatpush1.msra.mxu0 %v45
    %47 = vmatprep.subr.mxu0 0.0
    %v48 = vand.u32 %v21, 4294901760
    %49 = vmatpush1.msra.mxu0 %v48
    %50 = vmatprep.subr.mxu0 0.0
    %v51 = vand.u32 %v22, 4294901760
    %52 = vmatpush1.msra.mxu0 %v51
    %53 = vmatprep.subr.mxu0 0.0
    %v54 = vand.u32 %v23, 4294901760
    %55 = vmatpush1.msra.mxu0 %v54
    %56 = vmatprep.subr.mxu0 0.0
    %v57 = vand.u32 %v24, 4294901760
    %58 = vmatpush1.msra.mxu0 %v57
    %59 = vmatprep.subr.mxu0 0.0
    %v60 = vand.u32 %v25, 4294901760
    %61 = vmatpush1.msra.mxu0 %v60
    %62 = vmatprep.subr.mxu0 0.0
    %v63 = vand.u32 %v26, 4294901760
    %64 = vmatpush1.msra.mxu0 %v63
    %65 = vmatprep.subr.mxu0 0.0
    %v66 = vand.u32 %v27, 4294901760
    %67 = vmatpush1.msra.mxu0 %v66
    %68 = vmatprep.subr.mxu0 0.0
    %v69 = vand.u32 %v28, 4294901760
    %70 = vmatpush1.msra.mxu0 %v69
    %71 = vmatprep.subr.mxu0 0.0
    %v72 = vand.u32 %v29, 4294901760
    %73 = vmatpush1.msra.mxu0 %v72
    %74 = vmatprep.subr.mxu0 0.0
    %v75 = vand.u32 %v30, 4294901760
    %76 = vmatpush1.msra.mxu0 %v75
    %77 = vmatprep.subr.mxu0 0.0
    %v78 = vand.u32 %v31, 4294901760
    %79 = vmatpush1.msra.mxu0 %v78
    %80 = vmatprep.subr.mxu0 0.0
    %81 = vmatpush1.msra.mxu0 0.0
    %82 = vmatprep.subr.mxu0 0.0
    %83 = vmatpush1.msra.mxu0 0.0
    %84 = vmatprep.subr.mxu0 0.0
    %85 = vmatpush1.msra.mxu0 0.0
    %86 = vmatprep.subr.mxu0 0.0
    %87 = vmatpush1.msra.mxu0 0.0
    %88 = vmatprep.subr.mxu0 0.0
    %89 = vmatpush1.msra.mxu0 0.0
    %90 = vmatprep.subr.mxu0 0.0
    %91 = vmatpush1.msra.mxu0 0.0
    %92 = vmatprep.subr.mxu0 0.0
    %93 = vmatpush1.msra.mxu0 0.0
    %94 = vmatprep.subr.mxu0 0.0
    %95 = vmatpush1.msra.mxu0 0.0
    %96 = vmatprep.subr.mxu0 0.0
    %97 = vmatpush1.msra.mxu0 0.0
    %98 = vmatprep.subr.mxu0 0.0
    %99 = vmatpush1.msra.mxu0 0.0
    %100 = vmatprep.subr.mxu0 0.0
    %101 = vmatpush1.msra.mxu0 0.0
    %102 = vmatprep.subr.mxu0 0.0
    %103 = vmatpush1.msra.mxu0 0.0
    %104 = vmatprep.subr.mxu0 0.0
    %105 = vmatpush1.msra.mxu0 0.0
    %106 = vmatprep.subr.mxu0 0.0
    %107 = vmatpush1.msra.mxu0 0.0
    %108 = vmatprep.subr.mxu0 0.0
    %109 = vmatpush1.msra.mxu0 0.0
    %110 = vmatprep.subr.mxu0 0.0
    %111 = vmatpush1.msra.mxu0 0.0
    %112 = vmatprep.mubr.f32.mxu0 0.0
    %v113 = vand.u32 %v15, 4294901760
    %v114 = vsub.f32 %v15, %v113
    %v115 = vand.u32 %v114, 4294901760
    %v116 = vsub.f32 %v114, %v115
    %v117 = vand.u32 %v116, 4294901760
    %118 = vmatmul.mubr.f32.gmra.mrb[0].mxu0 %v117
    %v119 = vpop.f32.mrb[0].mxu0
    %v120 = vadd.f32 0.0, %v119
    %v121 = vpop.f32.mrb[0].mxu0
    %122 = vdwg.mxu0
    %123 = vmatprep.subr.mxu0 0.0
    %v124 = vand.u32 %v16, 4294901760
    %v125 = vsub.f32 %v16, %v124
    %v126 = vand.u32 %v125, 4294901760
    %v127 = vsub.f32 %v125, %v126
    %v128 = vand.u32 %v127, 4294901760
    %129 = vmatpush1.msra.mxu0 %v128
    %130 = vmatprep.subr.mxu0 0.0
    %v131 = vand.u32 %v17, 4294901760
    %v132 = vsub.f32 %v17, %v131
    %v133 = vand.u32 %v132, 4294901760
    %v134 = vsub.f32 %v132, %v133
    %v135 = vand.u32 %v134, 4294901760
    %136 = vmatpush1.msra.mxu0 %v135
    %137 = vmatprep.subr.mxu0 0.0
    %v138 = vand.u32 %v18, 4294901760
    %v139 = vsub.f32 %v18, %v138
    %v140 = vand.u32 %v139, 4294901760
    %v141 = vsub.f32 %v139, %v140
    %v142 = vand.u32 %v141, 4294901760
    %143 = vmatpush1.msra.mxu0 %v142
    %144 = vmatprep.subr.mxu0 0.0
    %v145 = vand.u32 %v19, 4294901760
    %v146 = vsub.f32 %v19, %v145
    %v147 = vand.u32 %v146, 4294901760
    %v148 = vsub.f32 %v146, %v147
    %v149 = vand.u32 %v148, 4294901760
    %150 = vmatpush1.msra.mxu0 %v149
    %151 = vmatprep.subr.mxu0 0.0
    %v152 = vand.u32 %v20, 4294901760
    %v153 = vsub.f32 %v20, %v152
    %v154 = vand.u32 %v153, 4294901760
    %v155 = vsub.f32 %v153, %v154
    %v156 = vand.u32 %v155, 4294901760
    %157 = vmatpush1.msra.mxu0 %v156
    %158 = vmatprep.subr.mxu0 0.0
    %v159 = vand.u32 %v21, 4294901760
    %v160 = vsub.f32 %v21, %v159
    %v161 = vand.u32 %v160, 4294901760
    %v162 = vsub.f32 %v160, %v161
    %v163 = vand.u32 %v162, 4294901760
    %164 = vmatpush1.msra.mxu0 %v163
    %165 = vmatprep.subr.mxu0 0.0
    %v166 = vand.u32 %v22, 4294901760
    %v167 = vsub.f32 %v22, %v166
    %v168 = vand.u32 %v167, 4294901760
    %v169 = vsub.f32 %v167, %v168
    %v170 = vand.u32 %v169, 4294901760
    %171 = vmatpush1.msra.mxu0 %v170
    %172 = vmatprep.subr.mxu0 0.0
    %v173 = vand.u32 %v23, 4294901760
    %v174 = vsub.f32 %v23, %v173
    %v175 = vand.u32 %v174, 4294901760
    %v176 = vsub.f32 %v174, %v175
    %v177 = vand.u32 %v176, 4294901760
    %178 = vmatpush1.msra.mxu0 %v177
    %179 = vmatprep.subr.mxu0 0.0
    %v180 = vand.u32 %v24, 4294901760
    %v181 = vsub.f32 %v24, %v180
    %v182 = vand.u32 %v181, 4294901760
    %v183 = vsub.f32 %v181, %v182
    %v184 = vand.u32 %v183, 4294901760
    %185 = vmatpush1.msra.mxu0 %v184
    %186 = vmatprep.subr.mxu0 0.0
    %v187 = vand.u32 %v25, 4294901760
    %v188 = vsub.f32 %v25, %v187
    %v189 = vand.u32 %v188, 4294901760
    %v190 = vsub.f32 %v188, %v189
    %v191 = vand.u32 %v190, 4294901760
    %192 = vmatpush1.msra.mxu0 %v191
    %193 = vmatprep.subr.mxu0 0.0
    %v194 = vand.u32 %v26, 4294901760
    %v195 = vsub.f32 %v26, %v194
    %v196 = vand.u32 %v195, 4294901760
    %v197 = vsub.f32 %v195, %v196
    %v198 = vand.u32 %v197, 4294901760
    %199 = vmatpush1.msra.mxu0 %v198
    %200 = vmatprep.subr.mxu0 0.0
    %v201 = vand.u32 %v27, 4294901760
    %v202 = vsub.f32 %v27, %v201
    %v203 = vand.u32 %v202, 4294901760
    %v204 = vsub.f32 %v202, %v203
    %v205 = vand.u32 %v204, 4294901760
    %206 = vmatpush1.msra.mxu0 %v205
    %207 = vmatprep.subr.mxu0 0.0
    %v208 = vand.u32 %v28, 4294901760
    %v209 = vsub.f32 %v28, %v208
    %v210 = vand.u32 %v209, 4294901760
    %v211 = vsub.f32 %v209, %v210
    %v212 = vand.u32 %v211, 4294901760
    %213 = vmatpush1.msra.mxu0 %v212
    %214 = vmatprep.subr.mxu0 0.0
    %v215 = vand.u32 %v29, 4294901760
    %v216 = vsub.f32 %v29, %v215
    %v217 = vand.u32 %v216, 4294901760
    %v218 = vsub.f32 %v216, %v217
    %v219 = vand.u32 %v218, 4294901760
    %220 = vmatpush1.msra.mxu0 %v219
    %221 = vmatprep.subr.mxu0 0.0
    %v222 = vand.u32 %v30, 4294901760
    %v223 = vsub.f32 %v30, %v222
    %v224 = vand.u32 %v223, 4294901760
    %v225 = vsub.f32 %v223, %v224
    %v226 = vand.u32 %v225, 4294901760
    %227 = vmatpush1.msra.mxu0 %v226
    %228 = vmatprep.subr.mxu0 0.0
    %v229 = vand.u32 %v31, 4294901760
    %v230 = vsub.f32 %v31, %v229
    %v231 = vand.u32 %v230, 4294901760
    %v232 = vsub.f32 %v230, %v231
    %v233 = vand.u32 %v232, 4294901760
    %234 = vmatpush1.msra.mxu0 %v233
    %235 = vmatprep.subr.mxu0 0.0
    %236 = vmatpush1.msra.mxu0 0.0
    %237 = vmatprep.subr.mxu0 0.0
    %238 = vmatpush1.msra.mxu0 0.0
    %239 = vmatprep.subr.mxu0 0.0
    %240 = vmatpush1.msra.mxu0 0.0
    %241 = vmatprep.subr.mxu0 0.0
    %242 = vmatpush1.msra.mxu0 0.0
    %243 = vmatprep.subr.mxu0 0.0
    %244 = vmatpush1.msra.mxu0 0.0
    %245 = vmatprep.subr.mxu0 0.0
    %246 = vmatpush1.msra.mxu0 0.0
    %247 = vmatprep.subr.mxu0 0.0
    %248 = vmatpush1.msra.mxu0 0.0
    %249 = vmatprep.subr.mxu0 0.0
    %250 = vmatpush1.msra.mxu0 0.0
    %251 = vmatprep.subr.mxu0 0.0
    %252 = vmatpush1.msra.mxu0 0.0
    %253 = vmatprep.subr.mxu0 0.0
    %254 = vmatpush1.msra.mxu0 0.0
    %255 = vmatprep.subr.mxu0 0.0
    %256 = vmatpush1.msra.mxu0 0.0
    %257 = vmatprep.subr.mxu0 0.0
    %258 = vmatpush1.msra.mxu0 0.0
    %259 = vmatprep.subr.mxu0 0.0
    %260 = vmatpush1.msra.mxu0 0.0
    %261 = vmatprep.subr.mxu0 0.0
    %262 = vmatpush1.msra.mxu0 0.0
    %263 = vmatprep.subr.mxu0 0.0
    %264 = vmatpush1.msra.mxu0 0.0
    %265 = vmatprep.subr.mxu0 0.0
    %266 = vmatpush1.msra.mxu0 0.0
    %267 = vmatprep.mubr.f32.mxu0 0.0
    %v268 = vand.u32 %v15, 4294901760
    %269 = vmatmul.mubr.f32.gmra.mrb[0].mxu0 %v268
    %v270 = vpop.f32.mrb[0].mxu0
    %v271 = vadd.f32 %v120, %v270
    %v272 = vpop.f32.mrb[0].mxu0
    %273 = vdwg.mxu0
    %274 = vmatprep.subr.mxu0 0.0
    %v275 = vand.u32 %v16, 4294901760
    %v276 = vsub.f32 %v16, %v275
    %277 = vmatpush1.msra.mxu0 %v276
    %278 = vmatprep.subr.mxu0 0.0
    %v279 = vand.u32 %v17, 4294901760
    %v280 = vsub.f32 %v17, %v279
    %281 = vmatpush1.msra.mxu0 %v280
    %282 = vmatprep.subr.mxu0 0.0
    %v283 = vand.u32 %v18, 4294901760
    %v284 = vsub.f32 %v18, %v283
    %285 = vmatpush1.msra.mxu0 %v284
    %286 = vmatprep.subr.mxu0 0.0
    %v287 = vand.u32 %v19, 4294901760
    %v288 = vsub.f32 %v19, %v287
    %289 = vmatpush1.msra.mxu0 %v288
    %290 = vmatprep.subr.mxu0 0.0
    %v291 = vand.u32 %v20, 4294901760
    %v292 = vsub.f32 %v20, %v291
    %293 = vmatpush1.msra.mxu0 %v292
    %294 = vmatprep.subr.mxu0 0.0
    %v295 = vand.u32 %v21, 4294901760
    %v296 = vsub.f32 %v21, %v295
    %297 = vmatpush1.msra.mxu0 %v296
    %298 = vmatprep.subr.mxu0 0.0
    %v299 = vand.u32 %v22, 4294901760
    %v300 = vsub.f32 %v22, %v299
    %301 = vmatpush1.msra.mxu0 %v300
    %302 = vmatprep.subr.mxu0 0.0
    %v303 = vand.u32 %v23, 4294901760
    %v304 = vsub.f32 %v23, %v303
    %305 = vmatpush1.msra.mxu0 %v304
    %306 = vmatprep.subr.mxu0 0.0
    %v307 = vand.u32 %v24, 4294901760
    %v308 = vsub.f32 %v24, %v307
    %309 = vmatpush1.msra.mxu0 %v308
    %310 = vmatprep.subr.mxu0 0.0
    %v311 = vand.u32 %v25, 4294901760
    %v312 = vsub.f32 %v25, %v311
    %313 = vmatpush1.msra.mxu0 %v312
    %314 = vmatprep.subr.mxu0 0.0
    %v315 = vand.u32 %v26, 4294901760
    %v316 = vsub.f32 %v26, %v315
    %317 = vmatpush1.msra.mxu0 %v316
    %318 = vmatprep.subr.mxu0 0.0
    %v319 = vand.u32 %v27, 4294901760
    %v320 = vsub.f32 %v27, %v319
    %321 = vmatpush1.msra.mxu0 %v320
    %322 = vmatprep.subr.mxu0 0.0
    %v323 = vand.u32 %v28, 4294901760
    %v324 = vsub.f32 %v28, %v323
    %325 = vmatpush1.msra.mxu0 %v324
    %326 = vmatprep.subr.mxu0 0.0
    %v327 = vand.u32 %v29, 4294901760
    %v328 = vsub.f32 %v29, %v327
    %329 = vmatpush1.msra.mxu0 %v328
    %330 = vmatprep.subr.mxu0 0.0
    %v331 = vand.u32 %v30, 4294901760
    %v332 = vsub.f32 %v30, %v331
    %333 = vmatpush1.msra.mxu0 %v332
    %334 = vmatprep.subr.mxu0 0.0
    %v335 = vand.u32 %v31, 4294901760
    %v336 = vsub.f32 %v31, %v335
    %337 = vmatpush1.msra.mxu0 %v336
    %338 = vmatprep.subr.mxu0 0.0
    %339 = vmatpush1.msra.mxu0 0.0
    %340 = vmatprep.subr.mxu0 0.0
    %341 = vmatpush1.msra.mxu0 0.0
    %342 = vmatprep.subr.mxu0 0.0
    %343 = vmatpush1.msra.mxu0 0.0
    %344 = vmatprep.subr.mxu0 0.0
    %345 = vmatpush1.msra.mxu0 0.0
    %346 = vmatprep.subr.mxu0 0.0
    %347 = vmatpush1.msra.mxu0 0.0
    %348 = vmatprep.subr.mxu0 0.0
    %349 = vmatpush1.msra.mxu0 0.0
    %350 = vmatprep.subr.mxu0 0.0
    %351 = vmatpush1.msra.mxu0 0.0
    %352 = vmatprep.subr.mxu0 0.0
    %353 = vmatpush1.msra.mxu0 0.0
    %354 = vmatprep.subr.mxu0 0.0
    %355 = vmatpush1.msra.mxu0 0.0
    %356 = vmatprep.subr.mxu0 0.0
    %357 = vmatpush1.msra.mxu0 0.0
    %358 = vmatprep.subr.mxu0 0.0
    %359 = vmatpush1.msra.mxu0 0.0
    %360 = vmatprep.subr.mxu0 0.0
    %361 = vmatpush1.msra.mxu0 0.0
    %362 = vmatprep.subr.mxu0 0.0
    %363 = vmatpush1.msra.mxu0 0.0
    %364 = vmatprep.subr.mxu0 0.0
    %365 = vmatpush1.msra.mxu0 0.0
    %366 = vmatprep.subr.mxu0 0.0
    %367 = vmatpush1.msra.mxu0 0.0
    %368 = vmatprep.subr.mxu0 0.0
    %369 = vmatpush1.msra.mxu0 0.0
    %370 = vmatprep.mubr.f32.mxu0 0.0
    %v371 = vand.u32 %v15, 4294901760
    %v372 = vsub.f32 %v15, %v371
    %373 = vmatmul.mubr.f32.gmra.mrb[0].mxu0 %v372
    %v374 = vpop.f32.mrb[0].mxu0
    %v375 = vadd.f32 %v271, %v374
    %v376 = vpop.f32.mrb[0].mxu0
    %377 = vdwg.mxu0
    %378 = vmatprep.subr.mxu0 0.0
    %v379 = vand.u32 %v16, 4294901760
    %380 = vmatpush1.msra.mxu0 %v379
    %381 = vmatprep.subr.mxu0 0.0
    %v382 = vand.u32 %v17, 4294901760
    %383 = vmatpush1.msra.mxu0 %v382
    %384 = vmatprep.subr.mxu0 0.0
    %v385 = vand.u32 %v18, 4294901760
    %386 = vmatpush1.msra.mxu0 %v385
    %387 = vmatprep.subr.mxu0 0.0
    %v388 = vand.u32 %v19, 4294901760
    %389 = vmatpush1.msra.mxu0 %v388
    %390 = vmatprep.subr.mxu0 0.0
    %v391 = vand.u32 %v20, 4294901760
    %392 = vmatpush1.msra.mxu0 %v391
    %393 = vmatprep.subr.mxu0 0.0
    %v394 = vand.u32 %v21, 4294901760
    %395 = vmatpush1.msra.mxu0 %v394
    %396 = vmatprep.subr.mxu0 0.0
    %v397 = vand.u32 %v22, 4294901760
    %398 = vmatpush1.msra.mxu0 %v397
    %399 = vmatprep.subr.mxu0 0.0
    %v400 = vand.u32 %v23, 4294901760
    %401 = vmatpush1.msra.mxu0 %v400
    %402 = vmatprep.subr.mxu0 0.0
    %v403 = vand.u32 %v24, 4294901760
    %404 = vmatpush1.msra.mxu0 %v403
    %405 = vmatprep.subr.mxu0 0.0
    %v406 = vand.u32 %v25, 4294901760
    %407 = vmatpush1.msra.mxu0 %v406
    %408 = vmatprep.subr.mxu0 0.0
    %v409 = vand.u32 %v26, 4294901760
    %410 = vmatpush1.msra.mxu0 %v409
    %411 = vmatprep.subr.mxu0 0.0
    %v412 = vand.u32 %v27, 4294901760
    %413 = vmatpush1.msra.mxu0 %v412
    %414 = vmatprep.subr.mxu0 0.0
    %v415 = vand.u32 %v28, 4294901760
    %416 = vmatpush1.msra.mxu0 %v415
    %417 = vmatprep.subr.mxu0 0.0
    %v418 = vand.u32 %v29, 4294901760
    %419 = vmatpush1.msra.mxu0 %v418
    %420 = vmatprep.subr.mxu0 0.0
    %v421 = vand.u32 %v30, 4294901760
    %422 = vmatpush1.msra.mxu0 %v421
    %423 = vmatprep.subr.mxu0 0.0
    %v424 = vand.u32 %v31, 4294901760
    %425 = vmatpush1.msra.mxu0 %v424
    %426 = vmatprep.subr.mxu0 0.0
    %427 = vmatpush1.msra.mxu0 0.0
    %428 = vmatprep.subr.mxu0 0.0
    %429 = vmatpush1.msra.mxu0 0.0
    %430 = vmatprep.subr.mxu0 0.0
    %431 = vmatpush1.msra.mxu0 0.0
    %432 = vmatprep.subr.mxu0 0.0
    %433 = vmatpush1.msra.mxu0 0.0
    %434 = vmatprep.subr.mxu0 0.0
    %435 = vmatpush1.msra.mxu0 0.0
    %436 = vmatprep.subr.mxu0 0.0
    %437 = vmatpush1.msra.mxu0 0.0
    %438 = vmatprep.subr.mxu0 0.0
    %439 = vmatpush1.msra.mxu0 0.0
    %440 = vmatprep.subr.mxu0 0.0
    %441 = vmatpush1.msra.mxu0 0.0
    %442 = vmatprep.subr.mxu0 0.0
    %443 = vmatpush1.msra.mxu0 0.0
    %444 = vmatprep.subr.mxu0 0.0
    %445 = vmatpush1.msra.mxu0 0.0
    %446 = vmatprep.subr.mxu0 0.0
    %447 = vmatpush1.msra.mxu0 0.0
    %448 = vmatprep.subr.mxu0 0.0
    %449 = vmatpush1.msra.mxu0 0.0
    %450 = vmatprep.subr.mxu0 0.0
    %451 = vmatpush1.msra.mxu0 0.0
    %452 = vmatprep.subr.mxu0 0.0
    %453 = vmatpush1.msra.mxu0 0.0
    %454 = vmatprep.subr.mxu0 0.0
    %455 = vmatpush1.msra.mxu0 0.0
    %456 = vmatprep.subr.mxu0 0.0
    %457 = vmatpush1.msra.mxu0 0.0
    %458 = vmatprep.mubr.f32.mxu0 0.0
    %v459 = vand.u32 %v15, 4294901760
    %v460 = vsub.f32 %v15, %v459
    %v461 = vand.u32 %v460, 4294901760
    %462 = vmatmul.mubr.f32.gmra.mrb[0].mxu0 %v461
    %v463 = vpop.f32.mrb[0].mxu0
    %v464 = vadd.f32 %v375, %v463
    %v465 = vpop.f32.mrb[0].mxu0
    %466 = vdwg.mxu0
    %467 = vmatprep.subr.mxu0 0.0
    %v468 = vand.u32 %v16, 4294901760
    %v469 = vsub.f32 %v16, %v468
    %v470 = vand.u32 %v469, 4294901760
    %471 = vmatpush1.msra.mxu0 %v470
    %472 = vmatprep.subr.mxu0 0.0
    %v473 = vand.u32 %v17, 4294901760
    %v474 = vsub.f32 %v17, %v473
    %v475 = vand.u32 %v474, 4294901760
    %476 = vmatpush1.msra.mxu0 %v475
    %477 = vmatprep.subr.mxu0 0.0
    %v478 = vand.u32 %v18, 4294901760
    %v479 = vsub.f32 %v18, %v478
    %v480 = vand.u32 %v479, 4294901760
    %481 = vmatpush1.msra.mxu0 %v480
    %482 = vmatprep.subr.mxu0 0.0
    %v483 = vand.u32 %v19, 4294901760
    %v484 = vsub.f32 %v19, %v483
    %v485 = vand.u32 %v484, 4294901760
    %486 = vmatpush1.msra.mxu0 %v485
    %487 = vmatprep.subr.mxu0 0.0
    %v488 = vand.u32 %v20, 4294901760
    %v489 = vsub.f32 %v20, %v488
    %v490 = vand.u32 %v489, 4294901760
    %491 = vmatpush1.msra.mxu0 %v490
    %492 = vmatprep.subr.mxu0 0.0
    %v493 = vand.u32 %v21, 4294901760
    %v494 = vsub.f32 %v21, %v493
    %v495 = vand.u32 %v494, 4294901760
    %496 = vmatpush1.msra.mxu0 %v495
    %497 = vmatprep.subr.mxu0 0.0
    %v498 = vand.u32 %v22, 4294901760
    %v499 = vsub.f32 %v22, %v498
    %v500 = vand.u32 %v499, 4294901760
    %501 = vmatpush1.msra.mxu0 %v500
    %502 = vmatprep.subr.mxu0 0.0
    %v503 = vand.u32 %v23, 4294901760
    %v504 = vsub.f32 %v23, %v503
    %v505 = vand.u32 %v504, 4294901760
    %506 = vmatpush1.msra.mxu0 %v505
    %507 = vmatprep.subr.mxu0 0.0
    %v508 = vand.u32 %v24, 4294901760
    %v509 = vsub.f32 %v24, %v508
    %v510 = vand.u32 %v509, 4294901760
    %511 = vmatpush1.msra.mxu0 %v510
    %512 = vmatprep.subr.mxu0 0.0
    %v513 = vand.u32 %v25, 4294901760
    %v514 = vsub.f32 %v25, %v513
    %v515 = vand.u32 %v514, 4294901760
    %516 = vmatpush1.msra.mxu0 %v515
    %517 = vmatprep.subr.mxu0 0.0
    %v518 = vand.u32 %v26, 4294901760
    %v519 = vsub.f32 %v26, %v518
    %v520 = vand.u32 %v519, 4294901760
    %521 = vmatpush1.msra.mxu0 %v520
    %522 = vmatprep.subr.mxu0 0.0
    %v523 = vand.u32 %v27, 4294901760
    %v524 = vsub.f32 %v27, %v523
    %v525 = vand.u32 %v524, 4294901760
    %526 = vmatpush1.msra.mxu0 %v525
    %527 = vmatprep.subr.mxu0 0.0
    %v528 = vand.u32 %v28, 4294901760
    %v529 = vsub.f32 %v28, %v528
    %v530 = vand.u32 %v529, 4294901760
    %531 = vmatpush1.msra.mxu0 %v530
    %532 = vmatprep.subr.mxu0 0.0
    %v533 = vand.u32 %v29, 4294901760
    %v534 = vsub.f32 %v29, %v533
    %v535 = vand.u32 %v534, 4294901760
    %536 = vmatpush1.msra.mxu0 %v535
    %537 = vmatprep.subr.mxu0 0.0
    %v538 = vand.u32 %v30, 4294901760
    %v539 = vsub.f32 %v30, %v538
    %v540 = vand.u32 %v539, 4294901760
    %541 = vmatpush1.msra.mxu0 %v540
    %542 = vmatprep.subr.mxu0 0.0
    %v543 = vand.u32 %v31, 4294901760
    %v544 = vsub.f32 %v31, %v543
    %v545 = vand.u32 %v544, 4294901760
    %546 = vmatpush1.msra.mxu0 %v545
    %547 = vmatprep.subr.mxu0 0.0
    %548 = vmatpush1.msra.mxu0 0.0
    %549 = vmatprep.subr.mxu0 0.0
    %550 = vmatpush1.msra.mxu0 0.0
    %551 = vmatprep.subr.mxu0 0.0
    %552 = vmatpush1.msra.mxu0 0.0
    %553 = vmatprep.subr.mxu0 0.0
    %554 = vmatpush1.msra.mxu0 0.0
    %555 = vmatprep.subr.mxu0 0.0
    %556 = vmatpush1.msra.mxu0 0.0
    %557 = vmatprep.subr.mxu0 0.0
    %558 = vmatpush1.msra.mxu0 0.0
    %559 = vmatprep.subr.mxu0 0.0
    %560 = vmatpush1.msra.mxu0 0.0
    %561 = vmatprep.subr.mxu0 0.0
    %562 = vmatpush1.msra.mxu0 0.0
    %563 = vmatprep.subr.mxu0 0.0
    %564 = vmatpush1.msra.mxu0 0.0
    %565 = vmatprep.subr.mxu0 0.0
    %566 = vmatpush1.msra.mxu0 0.0
    %567 = vmatprep.subr.mxu0 0.0
    %568 = vmatpush1.msra.mxu0 0.0
    %569 = vmatprep.subr.mxu0 0.0
    %570 = vmatpush1.msra.mxu0 0.0
    %571 = vmatprep.subr.mxu0 0.0
    %572 = vmatpush1.msra.mxu0 0.0
    %573 = vmatprep.subr.mxu0 0.0
    %574 = vmatpush1.msra.mxu0 0.0
    %575 = vmatprep.subr.mxu0 0.0
    %576 = vmatpush1.msra.mxu0 0.0
    %577 = vmatprep.subr.mxu0 0.0
    %578 = vmatpush1.msra.mxu0 0.0
    %579 = vmatprep.mubr.f32.mxu0 0.0
    %v580 = vand.u32 %v15, 4294901760
    %581 = vmatmul.mubr.f32.gmra.mrb[0].mxu0 %v580
    %v582 = vpop.f32.mrb[0].mxu0
    %v583 = vadd.f32 %v464, %v582
    %v584 = vpop.f32.mrb[0].mxu0
    %585 = vdwg.mxu0
    %586 = vmatprep.subr.mxu0 0.0
    %v587 = vand.u32 %v16, 4294901760
    %588 = vmatpush1.msra.mxu0 %v587
    %589 = vmatprep.subr.mxu0 0.0
    %v590 = vand.u32 %v17, 4294901760
    %591 = vmatpush1.msra.mxu0 %v590
    %592 = vmatprep.subr.mxu0 0.0
    %v593 = vand.u32 %v18, 4294901760
    %594 = vmatpush1.msra.mxu0 %v593
    %595 = vmatprep.subr.mxu0 0.0
    %v596 = vand.u32 %v19, 4294901760
    %597 = vmatpush1.msra.mxu0 %v596
    %598 = vmatprep.subr.mxu0 0.0
    %v599 = vand.u32 %v20, 4294901760
    %600 = vmatpush1.msra.mxu0 %v599
    %601 = vmatprep.subr.mxu0 0.0
    %v602 = vand.u32 %v21, 4294901760
    %603 = vmatpush1.msra.mxu0 %v602
    %604 = vmatprep.subr.mxu0 0.0
    %v605 = vand.u32 %v22, 4294901760
    %606 = vmatpush1.msra.mxu0 %v605
    %607 = vmatprep.subr.mxu0 0.0
    %v608 = vand.u32 %v23, 4294901760
    %609 = vmatpush1.msra.mxu0 %v608
    %610 = vmatprep.subr.mxu0 0.0
    %v611 = vand.u32 %v24, 4294901760
    %612 = vmatpush1.msra.mxu0 %v611
    %613 = vmatprep.subr.mxu0 0.0
    %v614 = vand.u32 %v25, 4294901760
    %615 = vmatpush1.msra.mxu0 %v614
    %616 = vmatprep.subr.mxu0 0.0
    %v617 = vand.u32 %v26, 4294901760
    %618 = vmatpush1.msra.mxu0 %v617
    %619 = vmatprep.subr.mxu0 0.0
    %v620 = vand.u32 %v27, 4294901760
    %621 = vmatpush1.msra.mxu0 %v620
    %622 = vmatprep.subr.mxu0 0.0
    %v623 = vand.u32 %v28, 4294901760
    %624 = vmatpush1.msra.mxu0 %v623
    %625 = vmatprep.subr.mxu0 0.0
    %v626 = vand.u32 %v29, 4294901760
    %627 = vmatpush1.msra.mxu0 %v626
    %628 = vmatprep.subr.mxu0 0.0
    %v629 = vand.u32 %v30, 4294901760
    %630 = vmatpush1.msra.mxu0 %v629
    %631 = vmatprep.subr.mxu0 0.0
    %v632 = vand.u32 %v31, 4294901760
    %633 = vmatpush1.msra.mxu0 %v632
    %634 = vmatprep.subr.mxu0 0.0
    %635 = vmatpush1.msra.mxu0 0.0
    %636 = vmatprep.subr.mxu0 0.0
    %637 = vmatpush1.msra.mxu0 0.0
    %638 = vmatprep.subr.mxu0 0.0
    %639 = vmatpush1.msra.mxu0 0.0
    %640 = vmatprep.subr.mxu0 0.0
    %641 = vmatpush1.msra.mxu0 0.0
    %642 = vmatprep.subr.mxu0 0.0
    %643 = vmatpush1.msra.mxu0 0.0
    %644 = vmatprep.subr.mxu0 0.0
    %645 = vmatpush1.msra.mxu0 0.0
    %646 = vmatprep.subr.mxu0 0.0
    %647 = vmatpush1.msra.mxu0 0.0
    %648 = vmatprep.subr.mxu0 0.0
    %649 = vmatpush1.msra.mxu0 0.0
    %650 = vmatprep.subr.mxu0 0.0
    %651 = vmatpush1.msra.mxu0 0.0
    %652 = vmatprep.subr.mxu0 0.0
    %653 = vmatpush1.msra.mxu0 0.0
    %654 = vmatprep.subr.mxu0 0.0
    %655 = vmatpush1.msra.mxu0 0.0
    %656 = vmatprep.subr.mxu0 0.0
    %657 = vmatpush1.msra.mxu0 0.0
    %658 = vmatprep.subr.mxu0 0.0
    %659 = vmatpush1.msra.mxu0 0.0
    %660 = vmatprep.subr.mxu0 0.0
    %661 = vmatpush1.msra.mxu0 0.0
    %662 = vmatprep.subr.mxu0 0.0
    %663 = vmatpush1.msra.mxu0 0.0
    %664 = vmatprep.subr.mxu0 0.0
    %665 = vmatpush1.msra.mxu0 0.0
    %666 = vmatprep.mubr.f32.mxu0 0.0
    %v667 = vand.u32 %v15, 4294901760
    %668 = vmatmul.mubr.f32.gmra.mrb[0].mxu0 %v667
    %v669 = vpop.f32.mrb[0].mxu0
    %v670 = vadd.f32 %v583, %v669
    %v671 = vpop.f32.mrb[0].mxu0
    %672 = vdwg.mxu0
    %vm673 = vcmp.gt.f32.partialorder %v670, 0.0
    %v674 = vmul.f32 %v670, 0.2
    %v675 = vsel %vm673, %v670, %v674
    %vm676 = vcmask 25600
    %v677 = vsel %vm676, %v675, -inf
    %678 = vmax.xlane.f32.xlu0 %v677
    %v679 = vpop.xlane.xlu0 %678
    %v680 = vsub.f32 %v675, %v679
    %v681 = vmul.f32 %v680, 1.442695
    %v682 = vpow.pop %v681
    %v683 = vsel %vm676, %v682, 0.0
    %684 = vadd.xlane.f32.xlu0 %v683
    %v685 = vpop.xlane.xlu0 %684
    %v686 = vrcp.pop %v685
    %v687 = vmul.f32 %v682, %v686
    %v688 = vld [vmem:[%s2] sm:$0xf]
    %vm689 = vcmask 31744
    %v691 = vsel %vm689, %v687, 0
    %vm693 = vcmask 1043456
    %v695 = vsel %vm693, %v688, 0
    %697 = vmatprep.subr.mxu0 0.0
    %v698 = vand.u32 %v695, 4294901760
    %699 = vmatpush1.msra.mxu0 %v698
    %700 = vmatprep.subr.mxu0 0.0
    %701 = vmatpush1.msra.mxu0 0.0
    %702 = vmatprep.subr.mxu0 0.0
    %703 = vmatpush1.msra.mxu0 0.0
    %704 = vmatprep.subr.mxu0 0.0
    %705 = vmatpush1.msra.mxu0 0.0
    %706 = vmatprep.subr.mxu0 0.0
    %707 = vmatpush1.msra.mxu0 0.0
    %708 = vmatprep.subr.mxu0 0.0
    %709 = vmatpush1.msra.mxu0 0.0
    %710 = vmatprep.subr.mxu0 0.0
    %711 = vmatpush1.msra.mxu0 0.0
    %712 = vmatprep.subr.mxu0 0.0
    %713 = vmatpush1.msra.mxu0 0.0
    %714 = vmatprep.subr.mxu0 0.0
    %715 = vmatpush1.msra.mxu0 0.0
    %716 = vmatprep.subr.mxu0 0.0
    %717 = vmatpush1.msra.mxu0 0.0
    %718 = vmatprep.subr.mxu0 0.0
    %719 = vmatpush1.msra.mxu0 0.0
    %720 = vmatprep.subr.mxu0 0.0
    %721 = vmatpush1.msra.mxu0 0.0
    %722 = vmatprep.subr.mxu0 0.0
    %723 = vmatpush1.msra.mxu0 0.0
    %724 = vmatprep.subr.mxu0 0.0
    %725 = vmatpush1.msra.mxu0 0.0
    %726 = vmatprep.subr.mxu0 0.0
    %727 = vmatpush1.msra.mxu0 0.0
    %728 = vmatprep.subr.mxu0 0.0
    %729 = vmatpush1.msra.mxu0 0.0
    %730 = vmatprep.subr.mxu0 0.0
    %731 = vmatpush1.msra.mxu0 0.0
    %732 = vmatprep.subr.mxu0 0.0
    %733 = vmatpush1.msra.mxu0 0.0
    %734 = vmatprep.subr.mxu0 0.0
    %735 = vmatpush1.msra.mxu0 0.0
    %736 = vmatprep.subr.mxu0 0.0
    %737 = vmatpush1.msra.mxu0 0.0
    %738 = vmatprep.subr.mxu0 0.0
    %739 = vmatpush1.msra.mxu0 0.0
    %740 = vmatprep.subr.mxu0 0.0
    %741 = vmatpush1.msra.mxu0 0.0
    %742 = vmatprep.subr.mxu0 0.0
    %743 = vmatpush1.msra.mxu0 0.0
    %744 = vmatprep.subr.mxu0 0.0
    %745 = vmatpush1.msra.mxu0 0.0
    %746 = vmatprep.subr.mxu0 0.0
    %747 = vmatpush1.msra.mxu0 0.0
    %748 = vmatprep.subr.mxu0 0.0
    %749 = vmatpush1.msra.mxu0 0.0
    %750 = vmatprep.subr.mxu0 0.0
    %751 = vmatpush1.msra.mxu0 0.0
    %752 = vmatprep.subr.mxu0 0.0
    %753 = vmatpush1.msra.mxu0 0.0
    %754 = vmatprep.subr.mxu0 0.0
    %755 = vmatpush1.msra.mxu0 0.0
    %756 = vmatprep.subr.mxu0 0.0
    %757 = vmatpush1.msra.mxu0 0.0
    %758 = vmatprep.subr.mxu0 0.0
    %759 = vmatpush1.msra.mxu0 0.0
    %760 = vmatprep.subr.mxu0 0.0
    %761 = vmatpush1.msra.mxu0 0.0
    %762 = vmatprep.mubr.f32.mxu0 0.0
    %v763 = vand.u32 %v691, 4294901760
    %v764 = vsub.f32 %v691, %v763
    %v765 = vand.u32 %v764, 4294901760
    %v766 = vsub.f32 %v764, %v765
    %v767 = vand.u32 %v766, 4294901760
    %768 = vmatmul.mubr.f32.gmra.mrb[0].mxu0 %v767
    %v769 = vpop.f32.mrb[0].mxu0
    %v770 = vadd.f32 1.0, %v769
    %v771 = vpop.f32.mrb[0].mxu0
    %772 = vdwg.mxu0
    %773 = vmatprep.subr.mxu0 0.0
    %v774 = vand.u32 %v695, 4294901760
    %v775 = vsub.f32 %v695, %v774
    %v776 = vand.u32 %v775, 4294901760
    %v777 = vsub.f32 %v775, %v776
    %v778 = vand.u32 %v777, 4294901760
    %779 = vmatpush1.msra.mxu0 %v778
    %780 = vmatprep.subr.mxu0 0.0
    %781 = vmatpush1.msra.mxu0 0.0
    %782 = vmatprep.subr.mxu0 0.0
    %783 = vmatpush1.msra.mxu0 0.0
    %784 = vmatprep.subr.mxu0 0.0
    %785 = vmatpush1.msra.mxu0 0.0
    %786 = vmatprep.subr.mxu0 0.0
    %787 = vmatpush1.msra.mxu0 0.0
    %788 = vmatprep.subr.mxu0 0.0
    %789 = vmatpush1.msra.mxu0 0.0
    %790 = vmatprep.subr.mxu0 0.0
    %791 = vmatpush1.msra.mxu0 0.0
    %792 = vmatprep.subr.mxu0 0.0
    %793 = vmatpush1.msra.mxu0 0.0
    %794 = vmatprep.subr.mxu0 0.0
    %795 = vmatpush1.msra.mxu0 0.0
    %796 = vmatprep.subr.mxu0 0.0
    %797 = vmatpush1.msra.mxu0 0.0
    %798 = vmatprep.subr.mxu0 0.0
    %799 = vmatpush1.msra.mxu0 0.0
    %800 = vmatprep.subr.mxu0 0.0
    %801 = vmatpush1.msra.mxu0 0.0
    %802 = vmatprep.subr.mxu0 0.0
    %803 = vmatpush1.msra.mxu0 0.0
    %804 = vmatprep.subr.mxu0 0.0
    %805 = vmatpush1.msra.mxu0 0.0
    %806 = vmatprep.subr.mxu0 0.0
    %807 = vmatpush1.msra.mxu0 0.0
    %808 = vmatprep.subr.mxu0 0.0
    %809 = vmatpush1.msra.mxu0 0.0
    %810 = vmatprep.subr.mxu0 0.0
    %811 = vmatpush1.msra.mxu0 0.0
    %812 = vmatprep.subr.mxu0 0.0
    %813 = vmatpush1.msra.mxu0 0.0
    %814 = vmatprep.subr.mxu0 0.0
    %815 = vmatpush1.msra.mxu0 0.0
    %816 = vmatprep.subr.mxu0 0.0
    %817 = vmatpush1.msra.mxu0 0.0
    %818 = vmatprep.subr.mxu0 0.0
    %819 = vmatpush1.msra.mxu0 0.0
    %820 = vmatprep.subr.mxu0 0.0
    %821 = vmatpush1.msra.mxu0 0.0
    %822 = vmatprep.subr.mxu0 0.0
    %823 = vmatpush1.msra.mxu0 0.0
    %824 = vmatprep.subr.mxu0 0.0
    %825 = vmatpush1.msra.mxu0 0.0
    %826 = vmatprep.subr.mxu0 0.0
    %827 = vmatpush1.msra.mxu0 0.0
    %828 = vmatprep.subr.mxu0 0.0
    %829 = vmatpush1.msra.mxu0 0.0
    %830 = vmatprep.subr.mxu0 0.0
    %831 = vmatpush1.msra.mxu0 0.0
    %832 = vmatprep.subr.mxu0 0.0
    %833 = vmatpush1.msra.mxu0 0.0
    %834 = vmatprep.subr.mxu0 0.0
    %835 = vmatpush1.msra.mxu0 0.0
    %836 = vmatprep.subr.mxu0 0.0
    %837 = vmatpush1.msra.mxu0 0.0
    %838 = vmatprep.subr.mxu0 0.0
    %839 = vmatpush1.msra.mxu0 0.0
    %840 = vmatprep.subr.mxu0 0.0
    %841 = vmatpush1.msra.mxu0 0.0
    %842 = vmatprep.mubr.f32.mxu0 0.0
    %v843 = vand.u32 %v691, 4294901760
    %844 = vmatmul.mubr.f32.gmra.mrb[0].mxu0 %v843
    %v845 = vpop.f32.mrb[0].mxu0
    %v846 = vadd.f32 %v770, %v845
    %v847 = vpop.f32.mrb[0].mxu0
    %848 = vdwg.mxu0
    %849 = vmatprep.subr.mxu0 0.0
    %v850 = vand.u32 %v695, 4294901760
    %v851 = vsub.f32 %v695, %v850
    %852 = vmatpush1.msra.mxu0 %v851
    %853 = vmatprep.subr.mxu0 0.0
    %854 = vmatpush1.msra.mxu0 0.0
    %855 = vmatprep.subr.mxu0 0.0
    %856 = vmatpush1.msra.mxu0 0.0
    %857 = vmatprep.subr.mxu0 0.0
    %858 = vmatpush1.msra.mxu0 0.0
    %859 = vmatprep.subr.mxu0 0.0
    %860 = vmatpush1.msra.mxu0 0.0
    %861 = vmatprep.subr.mxu0 0.0
    %862 = vmatpush1.msra.mxu0 0.0
    %863 = vmatprep.subr.mxu0 0.0
    %864 = vmatpush1.msra.mxu0 0.0
    %865 = vmatprep.subr.mxu0 0.0
    %866 = vmatpush1.msra.mxu0 0.0
    %867 = vmatprep.subr.mxu0 0.0
    %868 = vmatpush1.msra.mxu0 0.0
    %869 = vmatprep.subr.mxu0 0.0
    %870 = vmatpush1.msra.mxu0 0.0
    %871 = vmatprep.subr.mxu0 0.0
    %872 = vmatpush1.msra.mxu0 0.0
    %873 = vmatprep.subr.mxu0 0.0
    %874 = vmatpush1.msra.mxu0 0.0
    %875 = vmatprep.subr.mxu0 0.0
    %876 = vmatpush1.msra.mxu0 0.0
    %877 = vmatprep.subr.mxu0 0.0
    %878 = vmatpush1.msra.mxu0 0.0
    %879 = vmatprep.subr.mxu0 0.0
    %880 = vmatpush1.msra.mxu0 0.0
    %881 = vmatprep.subr.mxu0 0.0
    %882 = vmatpush1.msra.mxu0 0.0
    %883 = vmatprep.subr.mxu0 0.0
    %884 = vmatpush1.msra.mxu0 0.0
    %885 = vmatprep.subr.mxu0 0.0
    %886 = vmatpush1.msra.mxu0 0.0
    %887 = vmatprep.subr.mxu0 0.0
    %888 = vmatpush1.msra.mxu0 0.0
    %889 = vmatprep.subr.mxu0 0.0
    %890 = vmatpush1.msra.mxu0 0.0
    %891 = vmatprep.subr.mxu0 0.0
    %892 = vmatpush1.msra.mxu0 0.0
    %893 = vmatprep.subr.mxu0 0.0
    %894 = vmatpush1.msra.mxu0 0.0
    %895 = vmatprep.subr.mxu0 0.0
    %896 = vmatpush1.msra.mxu0 0.0
    %897 = vmatprep.subr.mxu0 0.0
    %898 = vmatpush1.msra.mxu0 0.0
    %899 = vmatprep.subr.mxu0 0.0
    %900 = vmatpush1.msra.mxu0 0.0
    %901 = vmatprep.subr.mxu0 0.0
    %902 = vmatpush1.msra.mxu0 0.0
    %903 = vmatprep.subr.mxu0 0.0
    %904 = vmatpush1.msra.mxu0 0.0
    %905 = vmatprep.subr.mxu0 0.0
    %906 = vmatpush1.msra.mxu0 0.0
    %907 = vmatprep.subr.mxu0 0.0
    %908 = vmatpush1.msra.mxu0 0.0
    %909 = vmatprep.subr.mxu0 0.0
    %910 = vmatpush1.msra.mxu0 0.0
    %911 = vmatprep.subr.mxu0 0.0
    %912 = vmatpush1.msra.mxu0 0.0
    %913 = vmatprep.subr.mxu0 0.0
    %914 = vmatpush1.msra.mxu0 0.0
    %915 = vmatprep.mubr.f32.mxu0 0.0
    %v916 = vand.u32 %v691, 4294901760
    %v917 = vsub.f32 %v691, %v916
    %918 = vmatmul.mubr.f32.gmra.mrb[0].mxu0 %v917
    %v919 = vpop.f32.mrb[0].mxu0
    %v920 = vadd.f32 %v846, %v919
    %v921 = vpop.f32.mrb[0].mxu0
    %922 = vdwg.mxu0
    %923 = vmatprep.subr.mxu0 0.0
    %v924 = vand.u32 %v695, 4294901760
    %925 = vmatpush1.msra.mxu0 %v924
    %926 = vmatprep.subr.mxu0 0.0
    %927 = vmatpush1.msra.mxu0 0.0
    %928 = vmatprep.subr.mxu0 0.0
    %929 = vmatpush1.msra.mxu0 0.0
    %930 = vmatprep.subr.mxu0 0.0
    %931 = vmatpush1.msra.mxu0 0.0
    %932 = vmatprep.subr.mxu0 0.0
    %933 = vmatpush1.msra.mxu0 0.0
    %934 = vmatprep.subr.mxu0 0.0
    %935 = vmatpush1.msra.mxu0 0.0
    %936 = vmatprep.subr.mxu0 0.0
    %937 = vmatpush1.msra.mxu0 0.0
    %938 = vmatprep.subr.mxu0 0.0
    %939 = vmatpush1.msra.mxu0 0.0
    %940 = vmatprep.subr.mxu0 0.0
    %941 = vmatpush1.msra.mxu0 0.0
    %942 = vmatprep.subr.mxu0 0.0
    %943 = vmatpush1.msra.mxu0 0.0
    %944 = vmatprep.subr.mxu0 0.0
    %945 = vmatpush1.msra.mxu0 0.0
    %946 = vmatprep.subr.mxu0 0.0
    %947 = vmatpush1.msra.mxu0 0.0
    %948 = vmatprep.subr.mxu0 0.0
    %949 = vmatpush1.msra.mxu0 0.0
    %950 = vmatprep.subr.mxu0 0.0
    %951 = vmatpush1.msra.mxu0 0.0
    %952 = vmatprep.subr.mxu0 0.0
    %953 = vmatpush1.msra.mxu0 0.0
    %954 = vmatprep.subr.mxu0 0.0
    %955 = vmatpush1.msra.mxu0 0.0
    %956 = vmatprep.subr.mxu0 0.0
    %957 = vmatpush1.msra.mxu0 0.0
    %958 = vmatprep.subr.mxu0 0.0
    %959 = vmatpush1.msra.mxu0 0.0
    %960 = vmatprep.subr.mxu0 0.0
    %961 = vmatpush1.msra.mxu0 0.0
    %962 = vmatprep.subr.mxu0 0.0
    %963 = vmatpush1.msra.mxu0 0.0
    %964 = vmatprep.subr.mxu0 0.0
    %965 = vmatpush1.msra.mxu0 0.0
    %966 = vmatprep.subr.mxu0 0.0
    %967 = vmatpush1.msra.mxu0 0.0
    %968 = vmatprep.subr.mxu0 0.0
    %969 = vmatpush1.msra.mxu0 0.0
    %970 = vmatprep.subr.mxu0 0.0
    %971 = vmatpush1.msra.mxu0 0.0
    %972 = vmatprep.subr.mxu0 0.0
    %973 = vmatpush1.msra.mxu0 0.0
    %974 = vmatprep.subr.mxu0 0.0
    %975 = vmatpush1.msra.mxu0 0.0
    %976 = vmatprep.subr.mxu0 0.0
    %977 = vmatpush1.msra.mxu0 0.0
    %978 = vmatprep.subr.mxu0 0.0
    %979 = vmatpush1.msra.mxu0 0.0
    %980 = vmatprep.subr.mxu0 0.0
    %981 = vmatpush1.msra.mxu0 0.0
    %982 = vmatprep.subr.mxu0 0.0
    %983 = vmatpush1.msra.mxu0 0.0
    %984 = vmatprep.subr.mxu0 0.0
    %985 = vmatpush1.msra.mxu0 0.0
    %986 = vmatprep.subr.mxu0 0.0
    %987 = vmatpush1.msra.mxu0 0.0
    %988 = vmatprep.mubr.f32.mxu0 0.0
    %v989 = vand.u32 %v691, 4294901760
    %v990 = vsub.f32 %v691, %v989
    %v991 = vand.u32 %v990, 4294901760
    %992 = vmatmul.mubr.f32.gmra.mrb[0].mxu0 %v991
    %v993 = vpop.f32.mrb[0].mxu0
    %v994 = vadd.f32 %v920, %v993
    %v995 = vpop.f32.mrb[0].mxu0
    %996 = vdwg.mxu0
    %997 = vmatprep.subr.mxu0 0.0
    %v998 = vand.u32 %v695, 4294901760
    %v999 = vsub.f32 %v695, %v998
    %v1000 = vand.u32 %v999, 4294901760
    %1001 = vmatpush1.msra.mxu0 %v1000
    %1002 = vmatprep.subr.mxu0 0.0
    %1003 = vmatpush1.msra.mxu0 0.0
    %1004 = vmatprep.subr.mxu0 0.0
    %1005 = vmatpush1.msra.mxu0 0.0
    %1006 = vmatprep.subr.mxu0 0.0
    %1007 = vmatpush1.msra.mxu0 0.0
    %1008 = vmatprep.subr.mxu0 0.0
    %1009 = vmatpush1.msra.mxu0 0.0
    %1010 = vmatprep.subr.mxu0 0.0
    %1011 = vmatpush1.msra.mxu0 0.0
    %1012 = vmatprep.subr.mxu0 0.0
    %1013 = vmatpush1.msra.mxu0 0.0
    %1014 = vmatprep.subr.mxu0 0.0
    %1015 = vmatpush1.msra.mxu0 0.0
    %1016 = vmatprep.subr.mxu0 0.0
    %1017 = vmatpush1.msra.mxu0 0.0
    %1018 = vmatprep.subr.mxu0 0.0
    %1019 = vmatpush1.msra.mxu0 0.0
    %1020 = vmatprep.subr.mxu0 0.0
    %1021 = vmatpush1.msra.mxu0 0.0
    %1022 = vmatprep.subr.mxu0 0.0
    %1023 = vmatpush1.msra.mxu0 0.0
    %1024 = vmatprep.subr.mxu0 0.0
    %1025 = vmatpush1.msra.mxu0 0.0
    %1026 = vmatprep.subr.mxu0 0.0
    %1027 = vmatpush1.msra.mxu0 0.0
    %1028 = vmatprep.subr.mxu0 0.0
    %1029 = vmatpush1.msra.mxu0 0.0
    %1030 = vmatprep.subr.mxu0 0.0
    %1031 = vmatpush1.msra.mxu0 0.0
    %1032 = vmatprep.subr.mxu0 0.0
    %1033 = vmatpush1.msra.mxu0 0.0
    %1034 = vmatprep.subr.mxu0 0.0
    %1035 = vmatpush1.msra.mxu0 0.0
    %1036 = vmatprep.subr.mxu0 0.0
    %1037 = vmatpush1.msra.mxu0 0.0
    %1038 = vmatprep.subr.mxu0 0.0
    %1039 = vmatpush1.msra.mxu0 0.0
    %1040 = vmatprep.subr.mxu0 0.0
    %1041 = vmatpush1.msra.mxu0 0.0
    %1042 = vmatprep.subr.mxu0 0.0
    %1043 = vmatpush1.msra.mxu0 0.0
    %1044 = vmatprep.subr.mxu0 0.0
    %1045 = vmatpush1.msra.mxu0 0.0
    %1046 = vmatprep.subr.mxu0 0.0
    %1047 = vmatpush1.msra.mxu0 0.0
    %1048 = vmatprep.subr.mxu0 0.0
    %1049 = vmatpush1.msra.mxu0 0.0
    %1050 = vmatprep.subr.mxu0 0.0
    %1051 = vmatpush1.msra.mxu0 0.0
    %1052 = vmatprep.subr.mxu0 0.0
    %1053 = vmatpush1.msra.mxu0 0.0
    %1054 = vmatprep.subr.mxu0 0.0
    %1055 = vmatpush1.msra.mxu0 0.0
    %1056 = vmatprep.subr.mxu0 0.0
    %1057 = vmatpush1.msra.mxu0 0.0
    %1058 = vmatprep.subr.mxu0 0.0
    %1059 = vmatpush1.msra.mxu0 0.0
    %1060 = vmatprep.subr.mxu0 0.0
    %1061 = vmatpush1.msra.mxu0 0.0
    %1062 = vmatprep.subr.mxu0 0.0
    %1063 = vmatpush1.msra.mxu0 0.0
    %1064 = vmatprep.mubr.f32.mxu0 0.0
    %v1065 = vand.u32 %v691, 4294901760
    %1066 = vmatmul.mubr.f32.gmra.mrb[0].mxu0 %v1065
    %v1067 = vpop.f32.mrb[0].mxu0
    %v1068 = vadd.f32 %v994, %v1067
    %v1069 = vpop.f32.mrb[0].mxu0
    %1070 = vdwg.mxu0
    %1071 = vmatprep.subr.mxu0 0.0
    %v1072 = vand.u32 %v695, 4294901760
    %1073 = vmatpush1.msra.mxu0 %v1072
    %1074 = vmatprep.subr.mxu0 0.0
    %1075 = vmatpush1.msra.mxu0 0.0
    %1076 = vmatprep.subr.mxu0 0.0
    %1077 = vmatpush1.msra.mxu0 0.0
    %1078 = vmatprep.subr.mxu0 0.0
    %1079 = vmatpush1.msra.mxu0 0.0
    %1080 = vmatprep.subr.mxu0 0.0
    %1081 = vmatpush1.msra.mxu0 0.0
    %1082 = vmatprep.subr.mxu0 0.0
    %1083 = vmatpush1.msra.mxu0 0.0
    %1084 = vmatprep.subr.mxu0 0.0
    %1085 = vmatpush1.msra.mxu0 0.0
    %1086 = vmatprep.subr.mxu0 0.0
    %1087 = vmatpush1.msra.mxu0 0.0
    %1088 = vmatprep.subr.mxu0 0.0
    %1089 = vmatpush1.msra.mxu0 0.0
    %1090 = vmatprep.subr.mxu0 0.0
    %1091 = vmatpush1.msra.mxu0 0.0
    %1092 = vmatprep.subr.mxu0 0.0
    %1093 = vmatpush1.msra.mxu0 0.0
    %1094 = vmatprep.subr.mxu0 0.0
    %1095 = vmatpush1.msra.mxu0 0.0
    %1096 = vmatprep.subr.mxu0 0.0
    %1097 = vmatpush1.msra.mxu0 0.0
    %1098 = vmatprep.subr.mxu0 0.0
    %1099 = vmatpush1.msra.mxu0 0.0
    %1100 = vmatprep.subr.mxu0 0.0
    %1101 = vmatpush1.msra.mxu0 0.0
    %1102 = vmatprep.subr.mxu0 0.0
    %1103 = vmatpush1.msra.mxu0 0.0
    %1104 = vmatprep.subr.mxu0 0.0
    %1105 = vmatpush1.msra.mxu0 0.0
    %1106 = vmatprep.subr.mxu0 0.0
    %1107 = vmatpush1.msra.mxu0 0.0
    %1108 = vmatprep.subr.mxu0 0.0
    %1109 = vmatpush1.msra.mxu0 0.0
    %1110 = vmatprep.subr.mxu0 0.0
    %1111 = vmatpush1.msra.mxu0 0.0
    %1112 = vmatprep.subr.mxu0 0.0
    %1113 = vmatpush1.msra.mxu0 0.0
    %1114 = vmatprep.subr.mxu0 0.0
    %1115 = vmatpush1.msra.mxu0 0.0
    %1116 = vmatprep.subr.mxu0 0.0
    %1117 = vmatpush1.msra.mxu0 0.0
    %1118 = vmatprep.subr.mxu0 0.0
    %1119 = vmatpush1.msra.mxu0 0.0
    %1120 = vmatprep.subr.mxu0 0.0
    %1121 = vmatpush1.msra.mxu0 0.0
    %1122 = vmatprep.subr.mxu0 0.0
    %1123 = vmatpush1.msra.mxu0 0.0
    %1124 = vmatprep.subr.mxu0 0.0
    %1125 = vmatpush1.msra.mxu0 0.0
    %1126 = vmatprep.subr.mxu0 0.0
    %1127 = vmatpush1.msra.mxu0 0.0
    %1128 = vmatprep.subr.mxu0 0.0
    %1129 = vmatpush1.msra.mxu0 0.0
    %1130 = vmatprep.subr.mxu0 0.0
    %1131 = vmatpush1.msra.mxu0 0.0
    %1132 = vmatprep.subr.mxu0 0.0
    %1133 = vmatpush1.msra.mxu0 0.0
    %1134 = vmatprep.subr.mxu0 0.0
    %1135 = vmatpush1.msra.mxu0 0.0
    %1136 = vmatprep.mubr.f32.mxu0 0.0
    %v1137 = vand.u32 %v691, 4294901760
    %1138 = vmatmul.mubr.f32.gmra.mrb[0].mxu0 %v1137
    %v1139 = vpop.f32.mrb[0].mxu0
    %v1140 = vadd.f32 %v1068, %v1139
    %v1141 = vpop.f32.mrb[0].mxu0
    %1142 = vdwg.mxu0
    %v1143 = vmul.f32 %v15, %v1140
    %1144 = vst [vmem:[#allocation2] sm:$0x3] %v1143
    // Predicated region
    $region14: #{tpu_custom_call.1} parent=1 // pred_check
      _
    $region15: #{tpu_custom_call.1} parent=1 // pred_check_branch
      %1146 = sbr.rel (0) target = $region17
    $region16: #{tpu_custom_call.1} parent=1 // pred_region
      %s1148 = ssub.s32 32, 32
      %1149 = vsyncadd [#allocation3], %s1148
      %s1151 = sshll.u32 [#allocation2], 4
      %s1152 = int_to_ptr.vmem [resolvable:$true] %s1151
      %1154 = dma.vmem_to_hbm [thread:$0]  %s1152, 32, %s3, [#allocation3]
    $region17: #{tpu_custom_call.1} parent=1 // pred_fallthru
      _
    // Predicated region
    $region18: #{tpu_custom_call.1} parent=1 // pred_check
      _
    $region19: #{tpu_custom_call.1} parent=1 // pred_check_branch
      %1156 = sbr.rel (0) target = $region21
    $region20: #{tpu_custom_call.1} parent=1 // pred_region
      %1157 = dma.done [#allocation3], 32
    $region21: #{tpu_custom_call.1} parent=1 // pred_fallthru
      _
    %1158 = vsyncpa [#allocation3], 1

</llo_original>
